<compile_context>
chip_gen: v6e
topology: v6e:2x2x1
jax: 0.10.0
libtpu: 0.0.40
codegen_flags: <defaults>
</compile_context>

<pallas_src>
import jax
import jax.numpy as jnp
from jax.experimental import pallas as pl
from jax.experimental.pallas import tpu as pltpu

# ---- model hyper-params (match the PyTorch __init__) ------------------------
DIM = 256          # fusion dim
NUM_HEADS = 4
KEY_DIM = 16
ATTN_RATIO = 4
D_HEAD = ATTN_RATIO * KEY_DIM          # 64
HEAD_IN = DIM // NUM_HEADS             # 64
QKV_OUT = 2 * KEY_DIM + D_HEAD         # 96
NUM_CLASSES = 2
CLS_IN = DIM * 2                       # 512
CLS_HID = CLS_IN // 2                  # 256
SCALE = KEY_DIM ** (-0.5)
BN_EPS = 1e-5

OUT_PAD = 128                          # lane-dense padded logit width
DEFAULT_TB = 2048                      # max batch tile rows
MIN_SPLIT_B = 256                      # split into >=2 tiles above this (v7x)


def _round_up(a, b):
    return (a + b - 1) // b * b


# -----------------------------------------------------------------------------
# Pallas kernel: fused feature-add + folded cascade + proj + classifier head.
# Four MXU matmuls per [TB, *] batch tile; all activation streams are bf16.
# -----------------------------------------------------------------------------
def fused_kernel(mri_ref, pet_ref, cli_ref,
                 wcx_ref, bcx_ref, wcy_ref, bcy_ref,
                 wab_ref, bab_ref, w2_ref, b2_ref,
                 out_ref, cat_ref):
    cli = cli_ref[...]
    x = mri_ref[...] + cli                      # mri_cli_feature  [TB, 256]
    y = pet_ref[...] + cli                      # pet_cli_feature  [TB, 256]

    # cascaded cross-attention (L=1, softmax == 1) folded per branch
    cat_x = jnp.dot(x, wcx_ref[...],
                    preferred_element_type=jnp.float32) + bcx_ref[...]
    cat_y = jnp.dot(y, wcy_ref[...],
                    preferred_element_type=jnp.float32) + bcy_ref[...]

    # proj ReLU (f32) -> lane-concat into one [TB, 512] bf16 scratch
    cat_ref[:, :DIM] = jnp.maximum(cat_x, 0.0).astype(jnp.bfloat16)
    cat_ref[:, DIM:] = jnp.maximum(cat_y, 0.0).astype(jnp.bfloat16)

    # proj + classifier-L1 folded into one K=512 MXU pass
    h = jnp.dot(cat_ref[...], wab_ref[...],
                preferred_element_type=jnp.float32) + bab_ref[...]

    # classifier ReLU (Dropout == identity in eval) + final padded Linear
    h = jnp.maximum(h, 0.0).astype(jnp.bfloat16)
    logits = jnp.dot(h, w2_ref[...],
                     preferred_element_type=jnp.float32) + b2_ref[...]
    out_ref[...] = logits.astype(out_ref.dtype)


def _choose_tb(batch):
    """Balanced, 16-aligned (bf16 sublane pack) batch tile."""
    b_aligned = _round_up(batch, 16)
    # split across >=2 grid steps when there is enough work (v7x has 2 TCs)
    min_tiles = 2 if b_aligned >= MIN_SPLIT_B else 1
    n_tiles = max(pl.cdiv(b_aligned, DEFAULT_TB), min_tiles)
    return _round_up(pl.cdiv(b_aligned, n_tiles), 16)


def fusion_and_classify(mri_f, pet_f, cli_f, kp):
    """mri_f, pet_f, cli_f: [B, 256] float32 features.
    Returns logits [B, NUM_CLASSES] float32."""
    B = mri_f.shape[0]
    tb = _choose_tb(B)
    n_tiles = pl.cdiv(_round_up(B, 16), tb)
    b_pad = n_tiles * tb
    if b_pad != B:                              # pad (rows are independent)
        pad = ((0, b_pad - B), (0, 0))
        mri_f = jnp.pad(mri_f, pad)
        pet_f = jnp.pad(pet_f, pad)
        cli_f = jnp.pad(cli_f, pad)
    mri_f = mri_f.astype(jnp.bfloat16)
    pet_f = pet_f.astype(jnp.bfloat16)
    cli_f = cli_f.astype(jnp.bfloat16)

    weights = (kp["wcx"], kp["bcx"], kp["wcy"], kp["bcy"],
               kp["wab"], kp["bab"], kp["w2p"], kp["b2p"])

    act_spec = pl.BlockSpec((tb, DIM), lambda i: (i, 0))
    w_specs = [pl.BlockSpec(w.shape, lambda i: (0, 0)) for w in weights]

    weight_bytes = sum(int(w.size) * w.dtype.itemsize for w in weights)
    flops = 2 * b_pad * DIM * (DIM + DIM + 2 * DIM + OUT_PAD)
    bytes_accessed = (3 * b_pad * DIM * 2        # bf16 feature streams in
                      + b_pad * OUT_PAD * 2      # bf16 padded logits out
                      + weight_bytes)

    out = pl.pallas_call(
        fused_kernel,
        out_shape=jax.ShapeDtypeStruct((b_pad, OUT_PAD), jnp.bfloat16),
        grid=(n_tiles,),
        in_specs=[act_spec, act_spec, act_spec] + w_specs,
        out_specs=pl.BlockSpec((tb, OUT_PAD), lambda i: (i, 0)),
        scratch_shapes=[pltpu.VMEM((tb, 2 * DIM), jnp.bfloat16)],
        compiler_params=pltpu.CompilerParams(
            dimension_semantics=("parallel",),
            vmem_limit_bytes=48 * 1024 * 1024),
        cost_estimate=pl.CostEstimate(flops=flops, transcendentals=0,
                                      bytes_accessed=bytes_accessed),
    )(mri_f, pet_f, cli_f, *weights)
    return out[:B, :NUM_CLASSES].astype(jnp.float32)


# -----------------------------------------------------------------------------
# Parameter construction (deterministic, BN folded in eval mode).
# -----------------------------------------------------------------------------
def _fold_bn(w_oi, gamma, beta, mean, var):
    s = gamma / jnp.sqrt(var + BN_EPS)
    return w_oi * s[:, None], beta - mean * s


def make_params(key):
    keys = iter(jax.random.split(key, 256))

    def nrm(shape, scale=0.1):
        return scale * jax.random.normal(next(keys), shape, dtype=jnp.float32)

    def bn_params(c):
        gamma = 1.0 + nrm((c,), 0.1)
        beta = nrm((c,), 0.1)
        mean = nrm((c,), 0.1)
        var = 1.0 + 0.1 * jnp.abs(jax.random.normal(next(keys), (c,), jnp.float32))
        return gamma, beta, mean, var

    def conv1x1_bn(in_c, out_c):
        w = nrm((out_c, in_c), 0.1)
        w_eff, b_eff = _fold_bn(w, *bn_params(out_c))
        return w_eff.T, b_eff            # [in, out], [out]

    def dws_bn(c, ks=5):
        w = nrm((c, 1, ks), 0.1)         # depthwise Conv1d weight
        center = w[:, 0, ks // 2]        # only tap that touches the L=1 input
        gamma, beta, mean, var = bn_params(c)
        s = gamma / jnp.sqrt(var + BN_EPS)
        return center * s, beta - mean * s

    params = {}

    # per-head qkv + depthwise convs for the x and y branches
    for branch in ("x", "y"):
        wq, bq, ds_s, ds_b = [], [], [], []
        for _ in range(NUM_HEADS):
            w, b = conv1x1_bn(HEAD_IN, QKV_OUT)
            wq.append(w)
            bq.append(b)
            s, bb = dws_bn(KEY_DIM)
            ds_s.append(s)
            ds_b.append(bb)
        params[f"wq{branch}"] = jnp.stack(wq)      # [H, 64, 96]
        params[f"bq{branch}"] = jnp.stack(bq)      # [H, 96]
        params[f"ds{branch}_s"] = jnp.stack(ds_s)  # [H, 16]
        params[f"ds{branch}_b"] = jnp.stack(ds_b)  # [H, 16]

    # attention biases: nn.Parameter(torch.zeros(num_heads, resolution=1))
    params["ab"] = jnp.zeros((NUM_HEADS, 1), jnp.float32)

    # proj_x / proj_y: ReLU -> Conv1d(256,256,ks=1)+BN (synthetic non-zero BN)
    wpx, bpx = conv1x1_bn(DIM, DIM)
    wpy, bpy = conv1x1_bn(DIM, DIM)
    params["wpx"], params["bpx"] = wpx, bpx.reshape(1, DIM)
    params["wpy"], params["bpy"] = wpy, bpy.reshape(1, DIM)

    # MlpKan classifier
    params["w1"] = nrm((CLS_IN, CLS_HID), 0.05)
    params["b1"] = nrm((1, CLS_HID), 0.05)
    params["w2"] = nrm((CLS_HID, NUM_CLASSES), 0.05)
    params["b2"] = nrm((1, NUM_CLASSES), 0.05)

    # TODO(synk): get_no_pretrained_vision_encoder() definition is not provided;
    # stand-in = global average pool over (C,D,H,W) + Linear(1, 256).
    params["enc_mri_w"] = nrm((1, DIM), 0.5)
    params["enc_mri_b"] = nrm((1, DIM), 0.1)
    params["enc_pet_w"] = nrm((1, DIM), 0.5)
    params["enc_pet_b"] = nrm((1, DIM), 0.1)

    # TODO(synk): TransformerEncoder(output_dim=256) definition is not provided;
    # stand-in = Linear(9, 256).
    params["tab_w"] = nrm((9, DIM), 0.2)
    params["tab_b"] = nrm((1, DIM), 0.1)

    return params


def fold_params(p):
    """Fold cascade / proj / classifier-L1 into dense matmuls.

    Exact: softmax over the length-1 attention axis is identically 1.0, so the
    q / k / depthwise / attention-bias path is numerically dead and each
    branch's cascade is an affine map of its 256-dim input.
    """
    with jax.default_matmul_precision("float32"):
        def cascade(xin, wq, bq):
            feat = xin[:, :HEAD_IN]
            outs = []
            for i in range(NUM_HEADS):
                if i > 0:
                    feat = feat + xin[:, i * HEAD_IN:(i + 1) * HEAD_IN]
                qkv = feat @ wq[i] + bq[i][None, :]
                feat = qkv[:, 2 * KEY_DIM:]          # v columns; attn == 1.0
                outs.append(feat)
            return jnp.concatenate(outs, axis=1)     # [N, 256]

        eye = jnp.eye(DIM, dtype=jnp.float32)
        zeros = jnp.zeros((1, DIM), jnp.float32)

        bcx = cascade(zeros, p["wqx"], p["bqx"])               # [1, 256]
        wcx = cascade(eye, p["wqx"], p["bqx"]) - bcx           # [256, 256]
        bcy = cascade(zeros, p["wqy"], p["bqy"])
        wcy = cascade(eye, p["wqy"], p["bqy"]) - bcy

        # proj + classifier first Linear fold, merged into one [512, 256] W
        w1 = p["w1"]
        wa = p["wpx"] @ w1[:DIM, :]                            # [256, 256]
        wb = p["wpy"] @ w1[DIM:, :]                            # [256, 256]
        wab = jnp.concatenate([wa, wb], axis=0)                # [512, 256]
        bab = p["bpx"] @ w1[:DIM, :] + p["bpy"] @ w1[DIM:, :] + p["b1"]

        # pad final Linear to 128 output lanes (lane-dense stores)
        w2p = jnp.pad(p["w2"], ((0, 0), (0, OUT_PAD - NUM_CLASSES)))
        b2p = jnp.pad(p["b2"], ((0, 0), (0, OUT_PAD - NUM_CLASSES)))

    return {
        "wcx": wcx.astype(jnp.bfloat16), "bcx": bcx,
        "wcy": wcy.astype(jnp.bfloat16), "bcy": bcy,
        "wab": wab.astype(jnp.bfloat16), "bab": bab,
        "w2p": w2p.astype(jnp.bfloat16), "b2p": b2p,
    }


# -----------------------------------------------------------------------------
# Pure-JAX reference of the ORIGINAL unfused fusion + classifier (keeps the
# numerically dead q/k/depthwise/softmax path) — used only for validation.
# -----------------------------------------------------------------------------
def reference_fusion_classify(x, y, p):
    feat_x = x[:, :HEAD_IN]
    feat_y = y[:, :HEAD_IN]
    outs_x, outs_y = [], []
    for i in range(NUM_HEADS):
        if i > 0:
            feat_x = feat_x + x[:, i * HEAD_IN:(i + 1) * HEAD_IN]
            feat_y = feat_y + y[:, i * HEAD_IN:(i + 1) * HEAD_IN]
        qkv_x = feat_x @ p["wqx"][i] + p["bqx"][i][None, :]
        qkv_y = feat_y @ p["wqy"][i] + p["bqy"][i][None, :]
        q_x, k_x, v_x = (qkv_x[:, :KEY_DIM], qkv_x[:, KEY_DIM:2 * KEY_DIM],
                         qkv_x[:, 2 * KEY_DIM:])
        q_y, k_y, v_y = (qkv_y[:, :KEY_DIM], qkv_y[:, KEY_DIM:2 * KEY_DIM],
                         qkv_y[:, 2 * KEY_DIM:])
        q_x = q_x * p["dsx_s"][i][None, :] + p["dsx_b"][i][None, :]
        q_y = q_y * p["dsy_s"][i][None, :] + p["dsy_b"][i][None, :]
        logit_x = jnp.sum(q_y * k_x, axis=1, keepdims=True) * SCALE + p["ab"][i][None, :]
        logit_y = jnp.sum(q_x * k_y, axis=1, keepdims=True) * SCALE + p["ab"][i][None, :]
        attn_x = jax.nn.softmax(logit_x, axis=-1)
        attn_y = jax.nn.softmax(logit_y, axis=-1)
        feat_x = v_x * attn_x
        feat_y = v_y * attn_y
        outs_x.append(feat_x)
        outs_y.append(feat_y)
    cat_x = jnp.concatenate(outs_x, axis=1)
    cat_y = jnp.concatenate(outs_y, axis=1)
    rx = jnp.maximum(cat_x, 0.0) @ p["wpx"] + p["bpx"]
    ry = jnp.maximum(cat_y, 0.0) @ p["wpy"] + p["bpy"]
    r = jnp.concatenate([rx, ry], axis=1)
    h = jnp.maximum(r @ p["w1"] + p["b1"], 0.0)
    return h @ p["w2"] + p["b2"]


# -----------------------------------------------------------------------------
# Full forward pass (glue in plain JAX, hot path in the Pallas kernel).
# -----------------------------------------------------------------------------
@jax.jit
def tri_light_net_forward(mri, pet, cli, params, kparams):
    # TODO(synk): vision encoders / TransformerEncoder are not defined in the
    # reference source; deterministic stand-ins (avg-pool + Linear) used here.
    mri_feature = (jnp.mean(mri, axis=(1, 2, 3, 4))[:, None]
                   @ params["enc_mri_w"] + params["enc_mri_b"])
    pet_feature = (jnp.mean(pet, axis=(1, 2, 3, 4))[:, None]
                   @ params["enc_pet_w"] + params["enc_pet_b"])
    cli_feature = cli @ params["tab_w"] + params["tab_b"]

    # the mri+cli / pet+cli adds are fused inside the Pallas kernel
    return fusion_and_classify(mri_feature.astype(jnp.float32),
                               pet_feature.astype(jnp.float32),
                               cli_feature.astype(jnp.float32),
                               kparams)


if __name__ == "__main__":
    key = jax.random.PRNGKey(0)
    k_param, k_mri, k_pet, k_cli = jax.random.split(key, 4)

    params = make_params(k_param)
    kparams = fold_params(params)

    B = 2
    # small shapes consistent with the documented inputs ([B,1,D,H,W], [B,9])
    mri = jax.random.normal(k_mri, (B, 1, 8, 16, 8), dtype=jnp.float32)
    pet = jax.random.normal(k_pet, (B, 1, 8, 16, 8), dtype=jnp.float32)
    cli = jax.random.normal(k_cli, (B, 9), dtype=jnp.float32)

    out = tri_light_net_forward(mri, pet, cli, params, kparams)
    out = jax.block_until_ready(out)

    assert out.shape == (B, NUM_CLASSES), out.shape
    assert bool(jnp.all(jnp.isfinite(out)))

    # validate the algebraic fold + bf16 kernel against the unfused reference
    with jax.default_matmul_precision("float32"):
        mri_f = (jnp.mean(mri, axis=(1, 2, 3, 4))[:, None]
                 @ params["enc_mri_w"] + params["enc_mri_b"])
        pet_f = (jnp.mean(pet, axis=(1, 2, 3, 4))[:, None]
                 @ params["enc_pet_w"] + params["enc_pet_b"])
        cli_f = cli @ params["tab_w"] + params["tab_b"]
        ref = reference_fusion_classify(mri_f + cli_f, pet_f + cli_f, params)
    err = float(jnp.max(jnp.abs(out - ref)))
    scale = float(jnp.max(jnp.abs(ref)))
    assert err <= 0.05 + 0.05 * scale, (err, scale)

    print("KERNEL_OK")
</pallas_src>

<mosaic_0001>
module attributes {stable_mosaic.version = 11 : i64} {
  func.func @fused_kernel(%arg0: i32, %arg1: memref<16x256xbf16, #tpu.memory_space<vmem>>, %arg2: memref<16x256xbf16, #tpu.memory_space<vmem>>, %arg3: memref<16x256xbf16, #tpu.memory_space<vmem>>, %arg4: memref<256x256xbf16, #tpu.memory_space<vmem>>, %arg5: memref<1x256xf32, #tpu.memory_space<vmem>>, %arg6: memref<256x256xbf16, #tpu.memory_space<vmem>>, %arg7: memref<1x256xf32, #tpu.memory_space<vmem>>, %arg8: memref<512x256xbf16, #tpu.memory_space<vmem>>, %arg9: memref<1x256xf32, #tpu.memory_space<vmem>>, %arg10: memref<256x128xbf16, #tpu.memory_space<vmem>>, %arg11: memref<1x128xf32, #tpu.memory_space<vmem>>, %arg12: memref<16x128xbf16, #tpu.memory_space<vmem>>, %arg13: memref<16x512xbf16, #tpu.memory_space<vmem>>) attributes {dimension_semantics = [#tpu.dimension_semantics<parallel>], iteration_bounds = array<i64: 1>, scalar_prefetch = 0 : i64, scratch_operands = 1 : i64, tpu.core_type = #tpu.core_type<tc>, window_params = [{transform_indices = @transform_0, window_bounds = array<i64: 16, 256>}, {transform_indices = @transform_1, window_bounds = array<i64: 16, 256>}, {transform_indices = @transform_2, window_bounds = array<i64: 16, 256>}, {pipeline_mode = #tpu.pipeline_mode<synchronous>, transform_indices = @transform_3, window_bounds = array<i64: 256, 256>}, {pipeline_mode = #tpu.pipeline_mode<synchronous>, transform_indices = @transform_4, window_bounds = array<i64: 1, 256>}, {pipeline_mode = #tpu.pipeline_mode<synchronous>, transform_indices = @transform_5, window_bounds = array<i64: 256, 256>}, {pipeline_mode = #tpu.pipeline_mode<synchronous>, transform_indices = @transform_6, window_bounds = array<i64: 1, 256>}, {pipeline_mode = #tpu.pipeline_mode<synchronous>, transform_indices = @transform_7, window_bounds = array<i64: 512, 256>}, {pipeline_mode = #tpu.pipeline_mode<synchronous>, transform_indices = @transform_8, window_bounds = array<i64: 1, 256>}, {pipeline_mode = #tpu.pipeline_mode<synchronous>, transform_indices = @transform_9, window_bounds = array<i64: 256, 128>}, {pipeline_mode = #tpu.pipeline_mode<synchronous>, transform_indices = @transform_10, window_bounds = array<i64: 1, 128>}, {transform_indices = @transform_11, window_bounds = array<i64: 16, 128>}]} {
    %c0 = arith.constant 0 : index
    %c0_0 = arith.constant 0 : index
    %0 = vector.load %arg3[%c0, %c0_0] : memref<16x256xbf16, #tpu.memory_space<vmem>>, vector<16x256xbf16>
    %c0_1 = arith.constant 0 : index
    %c0_2 = arith.constant 0 : index
    %1 = vector.load %arg1[%c0_1, %c0_2] : memref<16x256xbf16, #tpu.memory_space<vmem>>, vector<16x256xbf16>
    %2 = arith.addf %1, %0 : vector<16x256xbf16>
    %c0_3 = arith.constant 0 : index
    %c0_4 = arith.constant 0 : index
    %3 = vector.load %arg2[%c0_3, %c0_4] : memref<16x256xbf16, #tpu.memory_space<vmem>>, vector<16x256xbf16>
    %4 = arith.addf %3, %0 : vector<16x256xbf16>
    %c0_5 = arith.constant 0 : index
    %c0_6 = arith.constant 0 : index
    %5 = vector.load %arg4[%c0_5, %c0_6] : memref<256x256xbf16, #tpu.memory_space<vmem>>, vector<256x256xbf16>
    %cst = arith.constant dense<0.000000e+00> : vector<16x256xf32>
    %6 = tpu.matmul %2, %5, %cst {dimension_numbers = #tpu.dot_dimension_numbers<[1], [0], [0], [1], [0, 0, 1, 1], [], []>} : vector<16x256xbf16>, vector<256x256xbf16>, vector<16x256xf32> -> vector<16x256xf32>
    %c0_7 = arith.constant 0 : index
    %c0_8 = arith.constant 0 : index
    %7 = vector.load %arg5[%c0_7, %c0_8] : memref<1x256xf32, #tpu.memory_space<vmem>>, vector<1x256xf32>
    %8 = vector.broadcast %7 : vector<1x256xf32> to vector<16x256xf32>
    %9 = arith.addf %6, %8 : vector<16x256xf32>
    %c0_9 = arith.constant 0 : index
    %c0_10 = arith.constant 0 : index
    %10 = vector.load %arg6[%c0_9, %c0_10] : memref<256x256xbf16, #tpu.memory_space<vmem>>, vector<256x256xbf16>
    %cst_11 = arith.constant dense<0.000000e+00> : vector<16x256xf32>
    %11 = tpu.matmul %4, %10, %cst_11 {dimension_numbers = #tpu.dot_dimension_numbers<[1], [0], [0], [1], [0, 0, 1, 1], [], []>} : vector<16x256xbf16>, vector<256x256xbf16>, vector<16x256xf32> -> vector<16x256xf32>
    %c0_12 = arith.constant 0 : index
    %c0_13 = arith.constant 0 : index
    %12 = vector.load %arg7[%c0_12, %c0_13] : memref<1x256xf32, #tpu.memory_space<vmem>>, vector<1x256xf32>
    %13 = vector.broadcast %12 : vector<1x256xf32> to vector<16x256xf32>
    %14 = arith.addf %11, %13 : vector<16x256xf32>
    %cst_14 = arith.constant 0.000000e+00 : f32
    %15 = vector.broadcast %cst_14 : f32 to vector<16x256xf32>
    %16 = arith.maximumf %9, %15 : vector<16x256xf32>
    %17 = arith.truncf %16 : vector<16x256xf32> to vector<16x256xbf16>
    %c0_15 = arith.constant 0 : index
    %c0_16 = arith.constant 0 : index
    %18 = vector.load %arg13[%c0_15, %c0_16] : memref<16x512xbf16, #tpu.memory_space<vmem>>, vector<16x256xbf16>
    tpu.vector_store %arg13[%c0_15, %c0_16], %17 {strides = array<i32>} : memref<16x512xbf16, #tpu.memory_space<vmem>>, vector<16x256xbf16>,
    %cst_17 = arith.constant 0.000000e+00 : f32
    %19 = vector.broadcast %cst_17 : f32 to vector<16x256xf32>
    %20 = arith.maximumf %14, %19 : vector<16x256xf32>
    %21 = arith.truncf %20 : vector<16x256xf32> to vector<16x256xbf16>
    %c0_18 = arith.constant 0 : index
    %c256 = arith.constant 256 : index
    %22 = vector.load %arg13[%c0_18, %c256] : memref<16x512xbf16, #tpu.memory_space<vmem>>, vector<16x256xbf16>
    tpu.vector_store %arg13[%c0_18, %c256], %21 {strides = array<i32>} : memref<16x512xbf16, #tpu.memory_space<vmem>>, vector<16x256xbf16>,
    %c0_19 = arith.constant 0 : index
    %c0_20 = arith.constant 0 : index
    %23 = vector.load %arg13[%c0_19, %c0_20] : memref<16x512xbf16, #tpu.memory_space<vmem>>, vector<16x512xbf16>
    %c0_21 = arith.constant 0 : index
    %c0_22 = arith.constant 0 : index
    %24 = vector.load %arg8[%c0_21, %c0_22] : memref<512x256xbf16, #tpu.memory_space<vmem>>, vector<512x256xbf16>
    %cst_23 = arith.constant dense<0.000000e+00> : vector<16x256xf32>
    %25 = tpu.matmul %23, %24, %cst_23 {dimension_numbers = #tpu.dot_dimension_numbers<[1], [0], [0], [1], [0, 0, 1, 1], [], []>} : vector<16x512xbf16>, vector<512x256xbf16>, vector<16x256xf32> -> vector<16x256xf32>
    %c0_24 = arith.constant 0 : index
    %c0_25 = arith.constant 0 : index
    %26 = vector.load %arg9[%c0_24, %c0_25] : memref<1x256xf32, #tpu.memory_space<vmem>>, vector<1x256xf32>
    %27 = vector.broadcast %26 : vector<1x256xf32> to vector<16x256xf32>
    %28 = arith.addf %25, %27 : vector<16x256xf32>
    %cst_26 = arith.constant 0.000000e+00 : f32
    %29 = vector.broadcast %cst_26 : f32 to vector<16x256xf32>
    %30 = arith.maximumf %28, %29 : vector<16x256xf32>
    %31 = arith.truncf %30 : vector<16x256xf32> to vector<16x256xbf16>
    %c0_27 = arith.constant 0 : index
    %c0_28 = arith.constant 0 : index
    %32 = vector.load %arg10[%c0_27, %c0_28] : memref<256x128xbf16, #tpu.memory_space<vmem>>, vector<256x128xbf16>
    %cst_29 = arith.constant dense<0.000000e+00> : vector<16x128xf32>
    %33 = tpu.matmul %31, %32, %cst_29 {dimension_numbers = #tpu.dot_dimension_numbers<[1], [0], [0], [1], [0, 0, 1, 1], [], []>} : vector<16x256xbf16>, vector<256x128xbf16>, vector<16x128xf32> -> vector<16x128xf32>
    %c0_30 = arith.constant 0 : index
    %c0_31 = arith.constant 0 : index
    %34 = vector.load %arg11[%c0_30, %c0_31] : memref<1x128xf32, #tpu.memory_space<vmem>>, vector<1x128xf32>
    %35 = vector.broadcast %34 : vector<1x128xf32> to vector<16x128xf32>
    %36 = arith.addf %33, %35 : vector<16x128xf32>
    %37 = arith.truncf %36 : vector<16x128xf32> to vector<16x128xbf16>
    %c0_32 = arith.constant 0 : index
    %c0_33 = arith.constant 0 : index
    %38 = vector.load %arg12[%c0_32, %c0_33] : memref<16x128xbf16, #tpu.memory_space<vmem>>, vector<16x128xbf16>
    tpu.vector_store %arg12[%c0_32, %c0_33], %37 {strides = array<i32>} : memref<16x128xbf16, #tpu.memory_space<vmem>>, vector<16x128xbf16>,
    return
  }
  func.func @transform_0(%arg0: i32) -> (i32, i32) {
    %c0_i32 = arith.constant 0 : i32
    %c0_i32_0 = arith.constant 0 : i32
    return %arg0, %c0_i32 : i32, i32
  }
  func.func @transform_1(%arg0: i32) -> (i32, i32) {
    %c0_i32 = arith.constant 0 : i32
    %c0_i32_0 = arith.constant 0 : i32
    return %arg0, %c0_i32 : i32, i32
  }
  func.func @transform_2(%arg0: i32) -> (i32, i32) {
    %c0_i32 = arith.constant 0 : i32
    %c0_i32_0 = arith.constant 0 : i32
    return %arg0, %c0_i32 : i32, i32
  }
  func.func @transform_3(%arg0: i32) -> (i32, i32) {
    %c0_i32 = arith.constant 0 : i32
    %c0_i32_0 = arith.constant 0 : i32
    %c0_i32_1 = arith.constant 0 : i32
    return %c0_i32, %c0_i32_0 : i32, i32
  }
  func.func @transform_4(%arg0: i32) -> (i32, i32) {
    %c0_i32 = arith.constant 0 : i32
    %c0_i32_0 = arith.constant 0 : i32
    %c0_i32_1 = arith.constant 0 : i32
    return %c0_i32, %c0_i32_0 : i32, i32
  }
  func.func @transform_5(%arg0: i32) -> (i32, i32) {
    %c0_i32 = arith.constant 0 : i32
    %c0_i32_0 = arith.constant 0 : i32
    %c0_i32_1 = arith.constant 0 : i32
    return %c0_i32, %c0_i32_0 : i32, i32
  }
  func.func @transform_6(%arg0: i32) -> (i32, i32) {
    %c0_i32 = arith.constant 0 : i32
    %c0_i32_0 = arith.constant 0 : i32
    %c0_i32_1 = arith.constant 0 : i32
    return %c0_i32, %c0_i32_0 : i32, i32
  }
  func.func @transform_7(%arg0: i32) -> (i32, i32) {
    %c0_i32 = arith.constant 0 : i32
    %c0_i32_0 = arith.constant 0 : i32
    %c0_i32_1 = arith.constant 0 : i32
    return %c0_i32, %c0_i32_0 : i32, i32
  }
  func.func @transform_8(%arg0: i32) -> (i32, i32) {
    %c0_i32 = arith.constant 0 : i32
    %c0_i32_0 = arith.constant 0 : i32
    %c0_i32_1 = arith.constant 0 : i32
    return %c0_i32, %c0_i32_0 : i32, i32
  }
  func.func @transform_9(%arg0: i32) -> (i32, i32) {
    %c0_i32 = arith.constant 0 : i32
    %c0_i32_0 = arith.constant 0 : i32
    %c0_i32_1 = arith.constant 0 : i32
    return %c0_i32, %c0_i32_0 : i32, i32
  }
  func.func @transform_10(%arg0: i32) -> (i32, i32) {
    %c0_i32 = arith.constant 0 : i32
    %c0_i32_0 = arith.constant 0 : i32
    %c0_i32_1 = arith.constant 0 : i32
    return %c0_i32, %c0_i32_0 : i32, i32
  }
  func.func @transform_11(%arg0: i32) -> (i32, i32) {
    %c0_i32 = arith.constant 0 : i32
    %c0_i32_0 = arith.constant 0 : i32
    return %arg0, %c0_i32 : i32, i32
  }
}

</mosaic_0001>

<llo_original>
// kernel: tri_light_net_forward.1
$region0: #{tri_light_net_forward.1}
  #allocation0 [shape = 'u32[]', space=smem, size = 0x4, offset = 0x4, fixed_abs, tag = 'smem constant byte address 0x4 - core index']
  #allocation1 [shape = 'u32[144,128]{1,0:T(1,128)}', space=vmem, size = 0x12000, scoped, tag = 'internal scratch']
  #allocation2 [shape = 'bf16[16,512]{1,0:T(8,128)(2,1)}', space=vmem, size = 0x4000, scoped, tag = 'scratch operand']
  %s0 = inlined_call_operand.vmem [shape: bf16[16,256], index: 0, kind: input, shape index: {}]
  %s1 = inlined_call_operand.vmem [shape: bf16[16,256], index: 1, kind: input, shape index: {}]
  %s2 = inlined_call_operand.vmem [shape: bf16[16,256], index: 2, kind: input, shape index: {}]
  %s3 = inlined_call_operand.vmem [shape: bf16[256,256], index: 3, kind: input, shape index: {}]
  %s4 = inlined_call_operand.vmem [shape: f32[1,256], index: 4, kind: input, shape index: {}]
  %s5 = inlined_call_operand.hbm [shape: bf16[256,256], index: 5, kind: input, shape index: {}]
  %s6 = inlined_call_operand.vmem [shape: f32[1,256], index: 6, kind: input, shape index: {}]
  %s7 = inlined_call_operand.hbm [shape: bf16[512,256], index: 7, kind: input, shape index: {}]
  %s8 = inlined_call_operand.vmem [shape: f32[1,256], index: 8, kind: input, shape index: {}]
  %s9 = inlined_call_operand.vmem [shape: bf16[256,128], index: 9, kind: input, shape index: {}]
  %s10 = inlined_call_operand.vmem [shape: f32[1,128], index: 10, kind: input, shape index: {}]
  %s11 = inlined_call_operand.vmem [shape: bf16[16,128], index: 11, kind: output, shape index: {}]
  %s12 = sld [smem:[#allocation0]]
  $region62: #{tri_light_net_forward.1} parent=0
    _
  %s14 = ssub.s32 1, %s12
  %s15 = scalar_select 0, %s14, %s12
  $region1: #{tri_light_net_forward.1} parent=0
    #allocation3 [shape = 'u8[131072]{0}', space=vmem, size = 0x20000, scoped, tag = 'input window, operand 5, single buffered']
    #allocation4 [shape = 's32[1]{0}', space=sflag, size = 0x4, scoped, tag = 'scoped memory for tri_light_net_forward.1']
    #allocation5 [shape = 'u8[262144]{0}', space=vmem, size = 0x40000, scoped, tag = 'input window, operand 7, single buffered']
    #allocation6 [shape = 's32[1]{0}', space=sflag, size = 0x4, scoped, tag = 'scoped memory for tri_light_net_forward.1']
    %16 = vsyncpa [#allocation4], 0
    %17 = vsyncpa [#allocation6], 0
    // Predicated region
    $region2: #{tri_light_net_forward.1} parent=1 // pred_check
      _
    $region3: #{tri_light_net_forward.1} parent=1 // pred_check_branch
      %19 = sbr.rel (0) target = $region5
    $region4: #{tri_light_net_forward.1} parent=1 // pred_region
      _
    $region5: #{tri_light_net_forward.1} parent=1 // pred_fallthru
      _
    // Predicated region
    $region6: #{tri_light_net_forward.1} parent=1 // pred_check
      _
    $region7: #{tri_light_net_forward.1} parent=1 // pred_check_branch
      %21 = sbr.rel (0) target = $region9
    $region8: #{tri_light_net_forward.1} parent=1 // pred_region
      _
    $region9: #{tri_light_net_forward.1} parent=1 // pred_fallthru
      _
    // Predicated region
    $region10: #{tri_light_net_forward.1} parent=1 // pred_check
      _
    $region11: #{tri_light_net_forward.1} parent=1 // pred_check_branch
      %23 = sbr.rel (0) target = $region13
    $region12: #{tri_light_net_forward.1} parent=1 // pred_region
      _
    $region13: #{tri_light_net_forward.1} parent=1 // pred_fallthru
      _
    // Predicated region
    $region14: #{tri_light_net_forward.1} parent=1 // pred_check
      _
    $region15: #{tri_light_net_forward.1} parent=1 // pred_check_branch
      %25 = sbr.rel (0) target = $region17
    $region16: #{tri_light_net_forward.1} parent=1 // pred_region
      _
    $region17: #{tri_light_net_forward.1} parent=1 // pred_fallthru
      _
    // Predicated region
    $region18: #{tri_light_net_forward.1} parent=1 // pred_check
      _
    $region19: #{tri_light_net_forward.1} parent=1 // pred_check_branch
      %27 = sbr.rel (0) target = $region21
    $region20: #{tri_light_net_forward.1} parent=1 // pred_region
      _
    $region21: #{tri_light_net_forward.1} parent=1 // pred_fallthru
      _
    // Predicated region
    $region22: #{tri_light_net_forward.1} parent=1 // pred_check
      _
    $region23: #{tri_light_net_forward.1} parent=1 // pred_check_branch
      %29 = sbr.rel (0) target = $region25
    $region24: #{tri_light_net_forward.1} parent=1 // pred_region
      %s31 = ssub.s32 4096, 4096
      %32 = vsyncadd [#allocation4], %s31
      %s33 = sshll.u32 [#allocation3], 4
      %s34 = int_to_ptr.vmem [resolvable:$true] %s33
      %39 = dma.hbm_to_vmem [thread:$0]  %s5, 4096, %s34, [#allocation4], 128, 128, 8
    $region25: #{tri_light_net_forward.1} parent=1 // pred_fallthru
      _
    // Predicated region
    $region26: #{tri_light_net_forward.1} parent=1 // pred_check
      _
    $region27: #{tri_light_net_forward.1} parent=1 // pred_check_branch
      %41 = sbr.rel (0) target = $region29
    $region28: #{tri_light_net_forward.1} parent=1 // pred_region
      _
    $region29: #{tri_light_net_forward.1} parent=1 // pred_fallthru
      _
    // Predicated region
    $region30: #{tri_light_net_forward.1} parent=1 // pred_check
      _
    $region31: #{tri_light_net_forward.1} parent=1 // pred_check_branch
      %43 = sbr.rel (0) target = $region33
    $region32: #{tri_light_net_forward.1} parent=1 // pred_region
      %s45 = ssub.s32 8192, 8192
      %46 = vsyncadd [#allocation6], %s45
      %s47 = sshll.u32 [#allocation5], 4
      %s48 = int_to_ptr.vmem [resolvable:$true] %s47
      %53 = dma.hbm_to_vmem [thread:$0]  %s7, 8192, %s48, [#allocation6], 128, 128, 8
    $region33: #{tri_light_net_forward.1} parent=1 // pred_fallthru
      _
    // Predicated region
    $region34: #{tri_light_net_forward.1} parent=1 // pred_check
      _
    $region35: #{tri_light_net_forward.1} parent=1 // pred_check_branch
      %55 = sbr.rel (0) target = $region37
    $region36: #{tri_light_net_forward.1} parent=1 // pred_region
      _
    $region37: #{tri_light_net_forward.1} parent=1 // pred_fallthru
      _
    // Predicated region
    $region38: #{tri_light_net_forward.1} parent=1 // pred_check
      _
    $region39: #{tri_light_net_forward.1} parent=1 // pred_check_branch
      %57 = sbr.rel (0) target = $region41
    $region40: #{tri_light_net_forward.1} parent=1 // pred_region
      _
    $region41: #{tri_light_net_forward.1} parent=1 // pred_fallthru
      _
    // Predicated region
    $region42: #{tri_light_net_forward.1} parent=1 // pred_check
      _
    $region43: #{tri_light_net_forward.1} parent=1 // pred_check_branch
      %59 = sbr.rel (0) target = $region45
    $region44: #{tri_light_net_forward.1} parent=1 // pred_region
      _
    $region45: #{tri_light_net_forward.1} parent=1 // pred_fallthru
      _
    // Predicated region
    $region46: #{tri_light_net_forward.1} parent=1 // pred_check
      _
    $region47: #{tri_light_net_forward.1} parent=1 // pred_check_branch
      %61 = sbr.rel (0) target = $region49
    $region48: #{tri_light_net_forward.1} parent=1 // pred_region
      %62 = dma.done [#allocation4], 4096
    $region49: #{tri_light_net_forward.1} parent=1 // pred_fallthru
      _
    // Predicated region
    $region50: #{tri_light_net_forward.1} parent=1 // pred_check
      _
    $region51: #{tri_light_net_forward.1} parent=1 // pred_check_branch
      %64 = sbr.rel (0) target = $region53
    $region52: #{tri_light_net_forward.1} parent=1 // pred_region
      %65 = dma.done [#allocation6], 8192
    $region53: #{tri_light_net_forward.1} parent=1 // pred_fallthru
      _
    %v67 = vld [vmem:[%s2] sm:$0xff]
    %v68 = vld [vmem:[%s2 + $0x8] sm:$0xff]
    %v69 = vld [vmem:[%s0] sm:$0xff]
    %v70 = vld [vmem:[%s0 + $0x8] sm:$0xff]
    %v71 = vadd.bf16 %v69, %v67
    %v72 = vadd.bf16 %v70, %v68
    %v73 = vld [vmem:[%s1] sm:$0xff]
    %v74 = vld [vmem:[%s1 + $0x8] sm:$0xff]
    %v75 = vadd.bf16 %v73, %v67
    %v76 = vadd.bf16 %v74, %v68
    %v77 = vld [vmem:[%s3] sm:$0xff]
    %v78 = vld [vmem:[%s3 + $0x8] sm:$0xff]
    %v79 = vld [vmem:[%s3 + $0x10] sm:$0xff]
    %v80 = vld [vmem:[%s3 + $0x18] sm:$0xff]
    %v81 = vld [vmem:[%s3 + $0x20] sm:$0xff]
    %v82 = vld [vmem:[%s3 + $0x28] sm:$0xff]
    %v83 = vld [vmem:[%s3 + $0x30] sm:$0xff]
    %v84 = vld [vmem:[%s3 + $0x38] sm:$0xff]
    %v85 = vld [vmem:[%s3 + $0x40] sm:$0xff]
    %v86 = vld [vmem:[%s3 + $0x48] sm:$0xff]
    %v87 = vld [vmem:[%s3 + $0x50] sm:$0xff]
    %v88 = vld [vmem:[%s3 + $0x58] sm:$0xff]
    %v89 = vld [vmem:[%s3 + $0x60] sm:$0xff]
    %v90 = vld [vmem:[%s3 + $0x68] sm:$0xff]
    %v91 = vld [vmem:[%s3 + $0x70] sm:$0xff]
    %v92 = vld [vmem:[%s3 + $0x78] sm:$0xff]
    %v93 = vld [vmem:[%s3 + $0x80] sm:$0xff]
    %v94 = vld [vmem:[%s3 + $0x88] sm:$0xff]
    %v95 = vld [vmem:[%s3 + $0x90] sm:$0xff]
    %v96 = vld [vmem:[%s3 + $0x98] sm:$0xff]
    %v97 = vld [vmem:[%s3 + $0xa0] sm:$0xff]
    %v98 = vld [vmem:[%s3 + $0xa8] sm:$0xff]
    %v99 = vld [vmem:[%s3 + $0xb0] sm:$0xff]
    %v100 = vld [vmem:[%s3 + $0xb8] sm:$0xff]
    %v101 = vld [vmem:[%s3 + $0xc0] sm:$0xff]
    %v102 = vld [vmem:[%s3 + $0xc8] sm:$0xff]
    %v103 = vld [vmem:[%s3 + $0xd0] sm:$0xff]
    %v104 = vld [vmem:[%s3 + $0xd8] sm:$0xff]
    %v105 = vld [vmem:[%s3 + $0xe0] sm:$0xff]
    %v106 = vld [vmem:[%s3 + $0xe8] sm:$0xff]
    %v107 = vld [vmem:[%s3 + $0xf0] sm:$0xff]
    %v108 = vld [vmem:[%s3 + $0xf8] sm:$0xff]
    %v109 = vld [vmem:[%s4] sm:$0x3]
    %v111 = vlaneseq
    %v112 = vshrl.u32 %v111, 7
    %v113 = vsub.s32 0, %v112
    %v114 = vrot.slane %v109, %v113
    %v115 = vlaneseq
    %v116 = vshrl.u32 %v115, 7
    %v117 = vsub.s32 1, %v116
    %v118 = vrot.slane %v109, %v117
    %v123 = vunpack.c.l.b16 %v71
    %v124 = vunpack.c.h.b16 %v71
    %v125 = vunpack.c.l.b16 %v72
    %v126 = vunpack.c.h.b16 %v72
    %v127 = vpack.c.b16 %v125, %v123
    %v128 = vpack.c.b16 %v126, %v124
    %v163 = vunpack.c.l.b16 %v77
    %v164 = vunpack.c.h.b16 %v77
    %v165 = vunpack.c.l.b16 %v78
    %v166 = vunpack.c.h.b16 %v78
    %v167 = vunpack.c.l.b16 %v79
    %v168 = vunpack.c.h.b16 %v79
    %v169 = vunpack.c.l.b16 %v80
    %v170 = vunpack.c.h.b16 %v80
    %v171 = vunpack.c.l.b16 %v81
    %v172 = vunpack.c.h.b16 %v81
    %v173 = vunpack.c.l.b16 %v82
    %v174 = vunpack.c.h.b16 %v82
    %v175 = vunpack.c.l.b16 %v83
    %v176 = vunpack.c.h.b16 %v83
    %v177 = vunpack.c.l.b16 %v84
    %v178 = vunpack.c.h.b16 %v84
    %v179 = vunpack.c.l.b16 %v85
    %v180 = vunpack.c.h.b16 %v85
    %v181 = vunpack.c.l.b16 %v86
    %v182 = vunpack.c.h.b16 %v86
    %v183 = vunpack.c.l.b16 %v87
    %v184 = vunpack.c.h.b16 %v87
    %v185 = vunpack.c.l.b16 %v88
    %v186 = vunpack.c.h.b16 %v88
    %v187 = vunpack.c.l.b16 %v89
    %v188 = vunpack.c.h.b16 %v89
    %v189 = vunpack.c.l.b16 %v90
    %v190 = vunpack.c.h.b16 %v90
    %v191 = vunpack.c.l.b16 %v91
    %v192 = vunpack.c.h.b16 %v91
    %v193 = vunpack.c.l.b16 %v92
    %v194 = vunpack.c.h.b16 %v92
    %v195 = vunpack.c.l.b16 %v93
    %v196 = vunpack.c.h.b16 %v93
    %v197 = vunpack.c.l.b16 %v94
    %v198 = vunpack.c.h.b16 %v94
    %v199 = vunpack.c.l.b16 %v95
    %v200 = vunpack.c.h.b16 %v95
    %v201 = vunpack.c.l.b16 %v96
    %v202 = vunpack.c.h.b16 %v96
    %v203 = vunpack.c.l.b16 %v97
    %v204 = vunpack.c.h.b16 %v97
    %v205 = vunpack.c.l.b16 %v98
    %v206 = vunpack.c.h.b16 %v98
    %v207 = vunpack.c.l.b16 %v99
    %v208 = vunpack.c.h.b16 %v99
    %v209 = vunpack.c.l.b16 %v100
    %v210 = vunpack.c.h.b16 %v100
    %v211 = vunpack.c.l.b16 %v101
    %v212 = vunpack.c.h.b16 %v101
    %v213 = vunpack.c.l.b16 %v102
    %v214 = vunpack.c.h.b16 %v102
    %v215 = vunpack.c.l.b16 %v103
    %v216 = vunpack.c.h.b16 %v103
    %v217 = vunpack.c.l.b16 %v104
    %v218 = vunpack.c.h.b16 %v104
    %v219 = vunpack.c.l.b16 %v105
    %v220 = vunpack.c.h.b16 %v105
    %v221 = vunpack.c.l.b16 %v106
    %v222 = vunpack.c.h.b16 %v106
    %v223 = vunpack.c.l.b16 %v107
    %v224 = vunpack.c.h.b16 %v107
    %v225 = vunpack.c.l.b16 %v108
    %v226 = vunpack.c.h.b16 %v108
    %v227 = vpack.c.b16 %v165, %v163
    %v228 = vpack.c.b16 %v166, %v164
    %v229 = vpack.c.b16 %v169, %v167
    %v230 = vpack.c.b16 %v170, %v168
    %v231 = vpack.c.b16 %v173, %v171
    %v232 = vpack.c.b16 %v174, %v172
    %v233 = vpack.c.b16 %v177, %v175
    %v234 = vpack.c.b16 %v178, %v176
    %v235 = vpack.c.b16 %v181, %v179
    %v236 = vpack.c.b16 %v182, %v180
    %v237 = vpack.c.b16 %v185, %v183
    %v238 = vpack.c.b16 %v186, %v184
    %v239 = vpack.c.b16 %v189, %v187
    %v240 = vpack.c.b16 %v190, %v188
    %v241 = vpack.c.b16 %v193, %v191
    %v242 = vpack.c.b16 %v194, %v192
    %v243 = vpack.c.b16 %v197, %v195
    %v244 = vpack.c.b16 %v198, %v196
    %v245 = vpack.c.b16 %v201, %v199
    %v246 = vpack.c.b16 %v202, %v200
    %v247 = vpack.c.b16 %v205, %v203
    %v248 = vpack.c.b16 %v206, %v204
    %v249 = vpack.c.b16 %v209, %v207
    %v250 = vpack.c.b16 %v210, %v208
    %v251 = vpack.c.b16 %v213, %v211
    %v252 = vpack.c.b16 %v214, %v212
    %v253 = vpack.c.b16 %v217, %v215
    %v254 = vpack.c.b16 %v218, %v216
    %v255 = vpack.c.b16 %v221, %v219
    %v256 = vpack.c.b16 %v222, %v220
    %v257 = vpack.c.b16 %v225, %v223
    %v258 = vpack.c.b16 %v226, %v224
    %291 = vmatprep.subr.bf16.mxu0 %v242
    %292 = vmatpush1.bf16.msra.mxu0 %v241
    %293 = vmatprep.subr.bf16.mxu0 %v240
    %294 = vmatpush1.bf16.msra.mxu0 %v239
    %295 = vmatprep.subr.bf16.mxu0 %v238
    %296 = vmatpush1.bf16.msra.mxu0 %v237
    %297 = vmatprep.subr.bf16.mxu0 %v236
    %298 = vmatpush1.bf16.msra.mxu0 %v235
    %299 = vmatprep.subr.bf16.mxu0 %v234
    %300 = vmatpush1.bf16.msra.mxu0 %v233
    %301 = vmatprep.subr.bf16.mxu0 %v232
    %302 = vmatpush1.bf16.msra.mxu0 %v231
    %303 = vmatprep.subr.bf16.mxu0 %v230
    %304 = vmatpush1.bf16.msra.mxu0 %v229
    %305 = vmatprep.subr.bf16.mxu0 %v228
    %306 = vmatpush1.bf16.msra.mxu0 %v227
    %307 = vmatprep.subr.bf16.mxu0 %v258
    %308 = vmatpush2.bf16.msra.mxu0 %v257
    %309 = vmatprep.subr.bf16.mxu0 %v256
    %310 = vmatpush2.bf16.msra.mxu0 %v255
    %311 = vmatprep.subr.bf16.mxu0 %v254
    %312 = vmatpush2.bf16.msra.mxu0 %v253
    %313 = vmatprep.subr.bf16.mxu0 %v252
    %314 = vmatpush2.bf16.msra.mxu0 %v251
    %315 = vmatprep.subr.bf16.mxu0 %v250
    %316 = vmatpush2.bf16.msra.mxu0 %v249
    %317 = vmatprep.subr.bf16.mxu0 %v248
    %318 = vmatpush2.bf16.msra.mxu0 %v247
    %319 = vmatprep.subr.bf16.mxu0 %v246
    %320 = vmatpush2.bf16.msra.mxu0 %v245
    %321 = vmatprep.subr.bf16.mxu0 %v244
    %322 = vmatpush2.bf16.msra.mxu0 %v243
    %323 = vmatprep.mubr.bf16.mxu0 %v128
    %324 = vmatmul.mubr.bf16.gmra.mxu0 %v127
    %v325 = vpop.f32.mrf.mxu0
    %v326 = vadd.f32 %v114, %v325
    %v327 = vpop.f32.mrf.mxu0
    %v328 = vadd.f32 %v118, %v327
    %v329 = vpop.f32.mrf.mxu0
    %v330 = vadd.f32 %v114, %v329
    %v331 = vpop.f32.mrf.mxu0
    %v332 = vadd.f32 %v118, %v331
    %333 = vdwg.mxu0
    %v334 = vld [vmem:[#allocation3] sm:$0xff]
    %v335 = vld [vmem:[#allocation3 + $0x8] sm:$0xff]
    %v336 = vld [vmem:[#allocation3 + $0x10] sm:$0xff]
    %v337 = vld [vmem:[#allocation3 + $0x18] sm:$0xff]
    %v338 = vld [vmem:[#allocation3 + $0x20] sm:$0xff]
    %v339 = vld [vmem:[#allocation3 + $0x28] sm:$0xff]
    %v340 = vld [vmem:[#allocation3 + $0x30] sm:$0xff]
    %v341 = vld [vmem:[#allocation3 + $0x38] sm:$0xff]
    %v342 = vld [vmem:[#allocation3 + $0x40] sm:$0xff]
    %v343 = vld [vmem:[#allocation3 + $0x48] sm:$0xff]
    %v344 = vld [vmem:[#allocation3 + $0x50] sm:$0xff]
    %v345 = vld [vmem:[#allocation3 + $0x58] sm:$0xff]
    %v346 = vld [vmem:[#allocation3 + $0x60] sm:$0xff]
    %v347 = vld [vmem:[#allocation3 + $0x68] sm:$0xff]
    %v348 = vld [vmem:[#allocation3 + $0x70] sm:$0xff]
    %v349 = vld [vmem:[#allocation3 + $0x78] sm:$0xff]
    %v350 = vld [vmem:[#allocation3 + $0x80] sm:$0xff]
    %v351 = vld [vmem:[#allocation3 + $0x88] sm:$0xff]
    %v352 = vld [vmem:[#allocation3 + $0x90] sm:$0xff]
    %v353 = vld [vmem:[#allocation3 + $0x98] sm:$0xff]
    %v354 = vld [vmem:[#allocation3 + $0xa0] sm:$0xff]
    %v355 = vld [vmem:[#allocation3 + $0xa8] sm:$0xff]
    %v356 = vld [vmem:[#allocation3 + $0xb0] sm:$0xff]
    %v357 = vld [vmem:[#allocation3 + $0xb8] sm:$0xff]
    %v358 = vld [vmem:[#allocation3 + $0xc0] sm:$0xff]
    %v359 = vld [vmem:[#allocation3 + $0xc8] sm:$0xff]
    %v360 = vld [vmem:[#allocation3 + $0xd0] sm:$0xff]
    %v361 = vld [vmem:[#allocation3 + $0xd8] sm:$0xff]
    %v362 = vld [vmem:[#allocation3 + $0xe0] sm:$0xff]
    %v363 = vld [vmem:[#allocation3 + $0xe8] sm:$0xff]
    %v364 = vld [vmem:[#allocation3 + $0xf0] sm:$0xff]
    %v365 = vld [vmem:[#allocation3 + $0xf8] sm:$0xff]
    %v366 = vld [vmem:[%s6] sm:$0x3]
    %v368 = vlaneseq
    %v369 = vshrl.u32 %v368, 7
    %v370 = vsub.s32 0, %v369
    %v371 = vrot.slane %v366, %v370
    %v372 = vlaneseq
    %v373 = vshrl.u32 %v372, 7
    %v374 = vsub.s32 1, %v373
    %v375 = vrot.slane %v366, %v374
    %v380 = vunpack.c.l.b16 %v75
    %v381 = vunpack.c.h.b16 %v75
    %v382 = vunpack.c.l.b16 %v76
    %v383 = vunpack.c.h.b16 %v76
    %v384 = vpack.c.b16 %v382, %v380
    %v385 = vpack.c.b16 %v383, %v381
    %v420 = vunpack.c.l.b16 %v334
    %v421 = vunpack.c.h.b16 %v334
    %v422 = vunpack.c.l.b16 %v335
    %v423 = vunpack.c.h.b16 %v335
    %v424 = vunpack.c.l.b16 %v336
    %v425 = vunpack.c.h.b16 %v336
    %v426 = vunpack.c.l.b16 %v337
    %v427 = vunpack.c.h.b16 %v337
    %v428 = vunpack.c.l.b16 %v338
    %v429 = vunpack.c.h.b16 %v338
    %v430 = vunpack.c.l.b16 %v339
    %v431 = vunpack.c.h.b16 %v339
    %v432 = vunpack.c.l.b16 %v340
    %v433 = vunpack.c.h.b16 %v340
    %v434 = vunpack.c.l.b16 %v341
    %v435 = vunpack.c.h.b16 %v341
    %v436 = vunpack.c.l.b16 %v342
    %v437 = vunpack.c.h.b16 %v342
    %v438 = vunpack.c.l.b16 %v343
    %v439 = vunpack.c.h.b16 %v343
    %v440 = vunpack.c.l.b16 %v344
    %v441 = vunpack.c.h.b16 %v344
    %v442 = vunpack.c.l.b16 %v345
    %v443 = vunpack.c.h.b16 %v345
    %v444 = vunpack.c.l.b16 %v346
    %v445 = vunpack.c.h.b16 %v346
    %v446 = vunpack.c.l.b16 %v347
    %v447 = vunpack.c.h.b16 %v347
    %v448 = vunpack.c.l.b16 %v348
    %v449 = vunpack.c.h.b16 %v348
    %v450 = vunpack.c.l.b16 %v349
    %v451 = vunpack.c.h.b16 %v349
    %v452 = vunpack.c.l.b16 %v350
    %v453 = vunpack.c.h.b16 %v350
    %v454 = vunpack.c.l.b16 %v351
    %v455 = vunpack.c.h.b16 %v351
    %v456 = vunpack.c.l.b16 %v352
    %v457 = vunpack.c.h.b16 %v352
    %v458 = vunpack.c.l.b16 %v353
    %v459 = vunpack.c.h.b16 %v353
    %v460 = vunpack.c.l.b16 %v354
    %v461 = vunpack.c.h.b16 %v354
    %v462 = vunpack.c.l.b16 %v355
    %v463 = vunpack.c.h.b16 %v355
    %v464 = vunpack.c.l.b16 %v356
    %v465 = vunpack.c.h.b16 %v356
    %v466 = vunpack.c.l.b16 %v357
    %v467 = vunpack.c.h.b16 %v357
    %v468 = vunpack.c.l.b16 %v358
    %v469 = vunpack.c.h.b16 %v358
    %v470 = vunpack.c.l.b16 %v359
    %v471 = vunpack.c.h.b16 %v359
    %v472 = vunpack.c.l.b16 %v360
    %v473 = vunpack.c.h.b16 %v360
    %v474 = vunpack.c.l.b16 %v361
    %v475 = vunpack.c.h.b16 %v361
    %v476 = vunpack.c.l.b16 %v362
    %v477 = vunpack.c.h.b16 %v362
    %v478 = vunpack.c.l.b16 %v363
    %v479 = vunpack.c.h.b16 %v363
    %v480 = vunpack.c.l.b16 %v364
    %v481 = vunpack.c.h.b16 %v364
    %v482 = vunpack.c.l.b16 %v365
    %v483 = vunpack.c.h.b16 %v365
    %v484 = vpack.c.b16 %v422, %v420
    %v485 = vpack.c.b16 %v423, %v421
    %v486 = vpack.c.b16 %v426, %v424
    %v487 = vpack.c.b16 %v427, %v425
    %v488 = vpack.c.b16 %v430, %v428
    %v489 = vpack.c.b16 %v431, %v429
    %v490 = vpack.c.b16 %v434, %v432
    %v491 = vpack.c.b16 %v435, %v433
    %v492 = vpack.c.b16 %v438, %v436
    %v493 = vpack.c.b16 %v439, %v437
    %v494 = vpack.c.b16 %v442, %v440
    %v495 = vpack.c.b16 %v443, %v441
    %v496 = vpack.c.b16 %v446, %v444
    %v497 = vpack.c.b16 %v447, %v445
    %v498 = vpack.c.b16 %v450, %v448
    %v499 = vpack.c.b16 %v451, %v449
    %v500 = vpack.c.b16 %v454, %v452
    %v501 = vpack.c.b16 %v455, %v453
    %v502 = vpack.c.b16 %v458, %v456
    %v503 = vpack.c.b16 %v459, %v457
    %v504 = vpack.c.b16 %v462, %v460
    %v505 = vpack.c.b16 %v463, %v461
    %v506 = vpack.c.b16 %v466, %v464
    %v507 = vpack.c.b16 %v467, %v465
    %v508 = vpack.c.b16 %v470, %v468
    %v509 = vpack.c.b16 %v471, %v469
    %v510 = vpack.c.b16 %v474, %v472
    %v511 = vpack.c.b16 %v475, %v473
    %v512 = vpack.c.b16 %v478, %v476
    %v513 = vpack.c.b16 %v479, %v477
    %v514 = vpack.c.b16 %v482, %v480
    %v515 = vpack.c.b16 %v483, %v481
    %548 = vmatprep.subr.bf16.mxu0 %v499
    %549 = vmatpush1.bf16.msra.mxu0 %v498
    %550 = vmatprep.subr.bf16.mxu0 %v497
    %551 = vmatpush1.bf16.msra.mxu0 %v496
    %552 = vmatprep.subr.bf16.mxu0 %v495
    %553 = vmatpush1.bf16.msra.mxu0 %v494
    %554 = vmatprep.subr.bf16.mxu0 %v493
    %555 = vmatpush1.bf16.msra.mxu0 %v492
    %556 = vmatprep.subr.bf16.mxu0 %v491
    %557 = vmatpush1.bf16.msra.mxu0 %v490
    %558 = vmatprep.subr.bf16.mxu0 %v489
    %559 = vmatpush1.bf16.msra.mxu0 %v488
    %560 = vmatprep.subr.bf16.mxu0 %v487
    %561 = vmatpush1.bf16.msra.mxu0 %v486
    %562 = vmatprep.subr.bf16.mxu0 %v485
    %563 = vmatpush1.bf16.msra.mxu0 %v484
    %564 = vmatprep.subr.bf16.mxu0 %v515
    %565 = vmatpush2.bf16.msra.mxu0 %v514
    %566 = vmatprep.subr.bf16.mxu0 %v513
    %567 = vmatpush2.bf16.msra.mxu0 %v512
    %568 = vmatprep.subr.bf16.mxu0 %v511
    %569 = vmatpush2.bf16.msra.mxu0 %v510
    %570 = vmatprep.subr.bf16.mxu0 %v509
    %571 = vmatpush2.bf16.msra.mxu0 %v508
    %572 = vmatprep.subr.bf16.mxu0 %v507
    %573 = vmatpush2.bf16.msra.mxu0 %v506
    %574 = vmatprep.subr.bf16.mxu0 %v505
    %575 = vmatpush2.bf16.msra.mxu0 %v504
    %576 = vmatprep.subr.bf16.mxu0 %v503
    %577 = vmatpush2.bf16.msra.mxu0 %v502
    %578 = vmatprep.subr.bf16.mxu0 %v501
    %579 = vmatpush2.bf16.msra.mxu0 %v500
    %580 = vmatprep.mubr.bf16.mxu0 %v385
    %581 = vmatmul.mubr.bf16.gmra.mxu0 %v384
    %v582 = vpop.f32.mrf.mxu0
    %v583 = vadd.f32 %v371, %v582
    %v584 = vpop.f32.mrf.mxu0
    %v585 = vadd.f32 %v375, %v584
    %v586 = vpop.f32.mrf.mxu0
    %v587 = vadd.f32 %v371, %v586
    %v588 = vpop.f32.mrf.mxu0
    %v589 = vadd.f32 %v375, %v588
    %590 = vdwg.mxu0
    %v591 = vmax.f32 %v326, 0.0
    %v592 = vmax.f32 %v328, 0.0
    %v593 = vmax.f32 %v330, 0.0
    %v594 = vmax.f32 %v332, 0.0
    %v595 = vpack.c.bf16 %v593, %v591
    %v596 = vpack.c.bf16 %v594, %v592
    %v599 = vunpack.c.l.b16 %v595
    %v600 = vunpack.c.l.b16 %v596
    %v601 = vunpack.c.h.b16 %v595
    %v602 = vunpack.c.h.b16 %v596
    %v603 = vpack.c.b16 %v600, %v599
    %v604 = vpack.c.b16 %v602, %v601
    %607 = vst [vmem:[#allocation2] sm:$0xff] %v603
    %608 = vst [vmem:[#allocation2 + $0x10] sm:$0xff] %v604
    %v609 = vmax.f32 %v583, 0.0
    %v610 = vmax.f32 %v585, 0.0
    %v611 = vmax.f32 %v587, 0.0
    %v612 = vmax.f32 %v589, 0.0
    %v613 = vpack.c.bf16 %v611, %v609
    %v614 = vpack.c.bf16 %v612, %v610
    %v617 = vunpack.c.l.b16 %v613
    %v618 = vunpack.c.l.b16 %v614
    %v619 = vunpack.c.h.b16 %v613
    %v620 = vunpack.c.h.b16 %v614
    %v621 = vpack.c.b16 %v618, %v617
    %v622 = vpack.c.b16 %v620, %v619
    %625 = vst [vmem:[#allocation2 + $0x8] sm:$0xff] %v621
    %626 = vst [vmem:[#allocation2 + $0x18] sm:$0xff] %v622
    %v627 = vld [vmem:[#allocation2] sm:$0xff]
    %v628 = vld [vmem:[#allocation2 + $0x8] sm:$0xff]
    %v629 = vld [vmem:[#allocation2 + $0x10] sm:$0xff]
    %v630 = vld [vmem:[#allocation2 + $0x18] sm:$0xff]
    %v631 = vld [vmem:[#allocation5] sm:$0xff]
    %v632 = vld [vmem:[#allocation5 + $0x8] sm:$0xff]
    %v633 = vld [vmem:[#allocation5 + $0x10] sm:$0xff]
    %v634 = vld [vmem:[#allocation5 + $0x18] sm:$0xff]
    %v635 = vld [vmem:[#allocation5 + $0x20] sm:$0xff]
    %v636 = vld [vmem:[#allocation5 + $0x28] sm:$0xff]
    %v637 = vld [vmem:[#allocation5 + $0x30] sm:$0xff]
    %v638 = vld [vmem:[#allocation5 + $0x38] sm:$0xff]
    %v639 = vld [vmem:[#allocation5 + $0x40] sm:$0xff]
    %v640 = vld [vmem:[#allocation5 + $0x48] sm:$0xff]
    %v641 = vld [vmem:[#allocation5 + $0x50] sm:$0xff]
    %v642 = vld [vmem:[#allocation5 + $0x58] sm:$0xff]
    %v643 = vld [vmem:[#allocation5 + $0x60] sm:$0xff]
    %v644 = vld [vmem:[#allocation5 + $0x68] sm:$0xff]
    %v645 = vld [vmem:[#allocation5 + $0x70] sm:$0xff]
    %v646 = vld [vmem:[#allocation5 + $0x78] sm:$0xff]
    %v647 = vld [vmem:[#allocation5 + $0x80] sm:$0xff]
    %v648 = vld [vmem:[#allocation5 + $0x88] sm:$0xff]
    %v649 = vld [vmem:[#allocation5 + $0x90] sm:$0xff]
    %v650 = vld [vmem:[#allocation5 + $0x98] sm:$0xff]
    %v651 = vld [vmem:[#allocation5 + $0xa0] sm:$0xff]
    %v652 = vld [vmem:[#allocation5 + $0xa8] sm:$0xff]
    %v653 = vld [vmem:[#allocation5 + $0xb0] sm:$0xff]
    %v654 = vld [vmem:[#allocation5 + $0xb8] sm:$0xff]
    %v655 = vld [vmem:[#allocation5 + $0xc0] sm:$0xff]
    %v656 = vld [vmem:[#allocation5 + $0xc8] sm:$0xff]
    %v657 = vld [vmem:[#allocation5 + $0xd0] sm:$0xff]
    %v658 = vld [vmem:[#allocation5 + $0xd8] sm:$0xff]
    %v659 = vld [vmem:[#allocation5 + $0xe0] sm:$0xff]
    %v660 = vld [vmem:[#allocation5 + $0xe8] sm:$0xff]
    %v661 = vld [vmem:[#allocation5 + $0xf0] sm:$0xff]
    %v662 = vld [vmem:[#allocation5 + $0xf8] sm:$0xff]
    %v663 = vld [vmem:[#allocation5 + $0x100] sm:$0xff]
    %v664 = vld [vmem:[#allocation5 + $0x108] sm:$0xff]
    %v665 = vld [vmem:[#allocation5 + $0x110] sm:$0xff]
    %v666 = vld [vmem:[#allocation5 + $0x118] sm:$0xff]
    %v667 = vld [vmem:[#allocation5 + $0x120] sm:$0xff]
    %v668 = vld [vmem:[#allocation5 + $0x128] sm:$0xff]
    %v669 = vld [vmem:[#allocation5 + $0x130] sm:$0xff]
    %v670 = vld [vmem:[#allocation5 + $0x138] sm:$0xff]
    %v671 = vld [vmem:[#allocation5 + $0x140] sm:$0xff]
    %v672 = vld [vmem:[#allocation5 + $0x148] sm:$0xff]
    %v673 = vld [vmem:[#allocation5 + $0x150] sm:$0xff]
    %v674 = vld [vmem:[#allocation5 + $0x158] sm:$0xff]
    %v675 = vld [vmem:[#allocation5 + $0x160] sm:$0xff]
    %v676 = vld [vmem:[#allocation5 + $0x168] sm:$0xff]
    %v677 = vld [vmem:[#allocation5 + $0x170] sm:$0xff]
    %v678 = vld [vmem:[#allocation5 + $0x178] sm:$0xff]
    %v679 = vld [vmem:[#allocation5 + $0x180] sm:$0xff]
    %v680 = vld [vmem:[#allocation5 + $0x188] sm:$0xff]
    %v681 = vld [vmem:[#allocation5 + $0x190] sm:$0xff]
    %v682 = vld [vmem:[#allocation5 + $0x198] sm:$0xff]
    %v683 = vld [vmem:[#allocation5 + $0x1a0] sm:$0xff]
    %v684 = vld [vmem:[#allocation5 + $0x1a8] sm:$0xff]
    %v685 = vld [vmem:[#allocation5 + $0x1b0] sm:$0xff]
    %v686 = vld [vmem:[#allocation5 + $0x1b8] sm:$0xff]
    %v687 = vld [vmem:[#allocation5 + $0x1c0] sm:$0xff]
    %v688 = vld [vmem:[#allocation5 + $0x1c8] sm:$0xff]
    %v689 = vld [vmem:[#allocation5 + $0x1d0] sm:$0xff]
    %v690 = vld [vmem:[#allocation5 + $0x1d8] sm:$0xff]
    %v691 = vld [vmem:[#allocation5 + $0x1e0] sm:$0xff]
    %v692 = vld [vmem:[#allocation5 + $0x1e8] sm:$0xff]
    %v693 = vld [vmem:[#allocation5 + $0x1f0] sm:$0xff]
    %v694 = vld [vmem:[#allocation5 + $0x1f8] sm:$0xff]
    %v695 = vld [vmem:[%s8] sm:$0x3]
    %v697 = vlaneseq
    %v698 = vshrl.u32 %v697, 7
    %v699 = vsub.s32 0, %v698
    %v700 = vrot.slane %v695, %v699
    %v701 = vlaneseq
    %v702 = vshrl.u32 %v701, 7
    %v703 = vsub.s32 1, %v702
    %v704 = vrot.slane %v695, %v703
    %v711 = vunpack.c.l.b16 %v627
    %v712 = vunpack.c.h.b16 %v627
    %v713 = vunpack.c.l.b16 %v628
    %v714 = vunpack.c.h.b16 %v628
    %v715 = vunpack.c.l.b16 %v629
    %v716 = vunpack.c.h.b16 %v629
    %v717 = vunpack.c.l.b16 %v630
    %v718 = vunpack.c.h.b16 %v630
    %v719 = vpack.c.b16 %v715, %v711
    %v720 = vpack.c.b16 %v716, %v712
    %v721 = vpack.c.b16 %v717, %v713
    %v722 = vpack.c.b16 %v718, %v714
    %v791 = vunpack.c.l.b16 %v631
    %v792 = vunpack.c.h.b16 %v631
    %v793 = vunpack.c.l.b16 %v632
    %v794 = vunpack.c.h.b16 %v632
    %v795 = vunpack.c.l.b16 %v633
    %v796 = vunpack.c.h.b16 %v633
    %v797 = vunpack.c.l.b16 %v634
    %v798 = vunpack.c.h.b16 %v634
    %v799 = vunpack.c.l.b16 %v635
    %v800 = vunpack.c.h.b16 %v635
    %v801 = vunpack.c.l.b16 %v636
    %v802 = vunpack.c.h.b16 %v636
    %v803 = vunpack.c.l.b16 %v637
    %v804 = vunpack.c.h.b16 %v637
    %v805 = vunpack.c.l.b16 %v638
    %v806 = vunpack.c.h.b16 %v638
    %v807 = vunpack.c.l.b16 %v639
    %v808 = vunpack.c.h.b16 %v639
    %v809 = vunpack.c.l.b16 %v640
    %v810 = vunpack.c.h.b16 %v640
    %v811 = vunpack.c.l.b16 %v641
    %v812 = vunpack.c.h.b16 %v641
    %v813 = vunpack.c.l.b16 %v642
    %v814 = vunpack.c.h.b16 %v642
    %v815 = vunpack.c.l.b16 %v643
    %v816 = vunpack.c.h.b16 %v643
    %v817 = vunpack.c.l.b16 %v644
    %v818 = vunpack.c.h.b16 %v644
    %v819 = vunpack.c.l.b16 %v645
    %v820 = vunpack.c.h.b16 %v645
    %v821 = vunpack.c.l.b16 %v646
    %v822 = vunpack.c.h.b16 %v646
    %v823 = vunpack.c.l.b16 %v647
    %v824 = vunpack.c.h.b16 %v647
    %v825 = vunpack.c.l.b16 %v648
    %v826 = vunpack.c.h.b16 %v648
    %v827 = vunpack.c.l.b16 %v649
    %v828 = vunpack.c.h.b16 %v649
    %v829 = vunpack.c.l.b16 %v650
    %v830 = vunpack.c.h.b16 %v650
    %v831 = vunpack.c.l.b16 %v651
    %v832 = vunpack.c.h.b16 %v651
    %v833 = vunpack.c.l.b16 %v652
    %v834 = vunpack.c.h.b16 %v652
    %v835 = vunpack.c.l.b16 %v653
    %v836 = vunpack.c.h.b16 %v653
    %v837 = vunpack.c.l.b16 %v654
    %v838 = vunpack.c.h.b16 %v654
    %v839 = vunpack.c.l.b16 %v655
    %v840 = vunpack.c.h.b16 %v655
    %v841 = vunpack.c.l.b16 %v656
    %v842 = vunpack.c.h.b16 %v656
    %v843 = vunpack.c.l.b16 %v657
    %v844 = vunpack.c.h.b16 %v657
    %v845 = vunpack.c.l.b16 %v658
    %v846 = vunpack.c.h.b16 %v658
    %v847 = vunpack.c.l.b16 %v659
    %v848 = vunpack.c.h.b16 %v659
    %v849 = vunpack.c.l.b16 %v660
    %v850 = vunpack.c.h.b16 %v660
    %v851 = vunpack.c.l.b16 %v661
    %v852 = vunpack.c.h.b16 %v661
    %v853 = vunpack.c.l.b16 %v662
    %v854 = vunpack.c.h.b16 %v662
    %v855 = vunpack.c.l.b16 %v663
    %v856 = vunpack.c.h.b16 %v663
    %v857 = vunpack.c.l.b16 %v664
    %v858 = vunpack.c.h.b16 %v664
    %v859 = vunpack.c.l.b16 %v665
    %v860 = vunpack.c.h.b16 %v665
    %v861 = vunpack.c.l.b16 %v666
    %v862 = vunpack.c.h.b16 %v666
    %v863 = vunpack.c.l.b16 %v667
    %v864 = vunpack.c.h.b16 %v667
    %v865 = vunpack.c.l.b16 %v668
    %v866 = vunpack.c.h.b16 %v668
    %v867 = vunpack.c.l.b16 %v669
    %v868 = vunpack.c.h.b16 %v669
    %v869 = vunpack.c.l.b16 %v670
    %v870 = vunpack.c.h.b16 %v670
    %v871 = vunpack.c.l.b16 %v671
    %v872 = vunpack.c.h.b16 %v671
    %v873 = vunpack.c.l.b16 %v672
    %v874 = vunpack.c.h.b16 %v672
    %v875 = vunpack.c.l.b16 %v673
    %v876 = vunpack.c.h.b16 %v673
    %v877 = vunpack.c.l.b16 %v674
    %v878 = vunpack.c.h.b16 %v674
    %v879 = vunpack.c.l.b16 %v675
    %v880 = vunpack.c.h.b16 %v675
    %v881 = vunpack.c.l.b16 %v676
    %v882 = vunpack.c.h.b16 %v676
    %v883 = vunpack.c.l.b16 %v677
    %v884 = vunpack.c.h.b16 %v677
    %v885 = vunpack.c.l.b16 %v678
    %v886 = vunpack.c.h.b16 %v678
    %v887 = vunpack.c.l.b16 %v679
    %v888 = vunpack.c.h.b16 %v679
    %v889 = vunpack.c.l.b16 %v680
    %v890 = vunpack.c.h.b16 %v680
    %v891 = vunpack.c.l.b16 %v681
    %v892 = vunpack.c.h.b16 %v681
    %v893 = vunpack.c.l.b16 %v682
    %v894 = vunpack.c.h.b16 %v682
    %v895 = vunpack.c.l.b16 %v683
    %v896 = vunpack.c.h.b16 %v683
    %v897 = vunpack.c.l.b16 %v684
    %v898 = vunpack.c.h.b16 %v684
    %v899 = vunpack.c.l.b16 %v685
    %v900 = vunpack.c.h.b16 %v685
    %v901 = vunpack.c.l.b16 %v686
    %v902 = vunpack.c.h.b16 %v686
    %v903 = vunpack.c.l.b16 %v687
    %v904 = vunpack.c.h.b16 %v687
    %v905 = vunpack.c.l.b16 %v688
    %v906 = vunpack.c.h.b16 %v688
    %v907 = vunpack.c.l.b16 %v689
    %v908 = vunpack.c.h.b16 %v689
    %v909 = vunpack.c.l.b16 %v690
    %v910 = vunpack.c.h.b16 %v690
    %v911 = vunpack.c.l.b16 %v691
    %v912 = vunpack.c.h.b16 %v691
    %v913 = vunpack.c.l.b16 %v692
    %v914 = vunpack.c.h.b16 %v692
    %v915 = vunpack.c.l.b16 %v693
    %v916 = vunpack.c.h.b16 %v693
    %v917 = vunpack.c.l.b16 %v694
    %v918 = vunpack.c.h.b16 %v694
    %v919 = vpack.c.b16 %v793, %v791
    %v920 = vpack.c.b16 %v794, %v792
    %v921 = vpack.c.b16 %v797, %v795
    %v922 = vpack.c.b16 %v798, %v796
    %v923 = vpack.c.b16 %v801, %v799
    %v924 = vpack.c.b16 %v802, %v800
    %v925 = vpack.c.b16 %v805, %v803
    %v926 = vpack.c.b16 %v806, %v804
    %v927 = vpack.c.b16 %v809, %v807
    %v928 = vpack.c.b16 %v810, %v808
    %v929 = vpack.c.b16 %v813, %v811
    %v930 = vpack.c.b16 %v814, %v812
    %v931 = vpack.c.b16 %v817, %v815
    %v932 = vpack.c.b16 %v818, %v816
    %v933 = vpack.c.b16 %v821, %v819
    %v934 = vpack.c.b16 %v822, %v820
    %v935 = vpack.c.b16 %v825, %v823
    %v936 = vpack.c.b16 %v826, %v824
    %v937 = vpack.c.b16 %v829, %v827
    %v938 = vpack.c.b16 %v830, %v828
    %v939 = vpack.c.b16 %v833, %v831
    %v940 = vpack.c.b16 %v834, %v832
    %v941 = vpack.c.b16 %v837, %v835
    %v942 = vpack.c.b16 %v838, %v836
    %v943 = vpack.c.b16 %v841, %v839
    %v944 = vpack.c.b16 %v842, %v840
    %v945 = vpack.c.b16 %v845, %v843
    %v946 = vpack.c.b16 %v846, %v844
    %v947 = vpack.c.b16 %v849, %v847
    %v948 = vpack.c.b16 %v850, %v848
    %v949 = vpack.c.b16 %v853, %v851
    %v950 = vpack.c.b16 %v854, %v852
    %v951 = vpack.c.b16 %v857, %v855
    %v952 = vpack.c.b16 %v858, %v856
    %v953 = vpack.c.b16 %v861, %v859
    %v954 = vpack.c.b16 %v862, %v860
    %v955 = vpack.c.b16 %v865, %v863
    %v956 = vpack.c.b16 %v866, %v864
    %v957 = vpack.c.b16 %v869, %v867
    %v958 = vpack.c.b16 %v870, %v868
    %v959 = vpack.c.b16 %v873, %v871
    %v960 = vpack.c.b16 %v874, %v872
    %v961 = vpack.c.b16 %v877, %v875
    %v962 = vpack.c.b16 %v878, %v876
    %v963 = vpack.c.b16 %v881, %v879
    %v964 = vpack.c.b16 %v882, %v880
    %v965 = vpack.c.b16 %v885, %v883
    %v966 = vpack.c.b16 %v886, %v884
    %v967 = vpack.c.b16 %v889, %v887
    %v968 = vpack.c.b16 %v890, %v888
    %v969 = vpack.c.b16 %v893, %v891
    %v970 = vpack.c.b16 %v894, %v892
    %v971 = vpack.c.b16 %v897, %v895
    %v972 = vpack.c.b16 %v898, %v896
    %v973 = vpack.c.b16 %v901, %v899
    %v974 = vpack.c.b16 %v902, %v900
    %v975 = vpack.c.b16 %v905, %v903
    %v976 = vpack.c.b16 %v906, %v904
    %v977 = vpack.c.b16 %v909, %v907
    %v978 = vpack.c.b16 %v910, %v908
    %v979 = vpack.c.b16 %v913, %v911
    %v980 = vpack.c.b16 %v914, %v912
    %v981 = vpack.c.b16 %v917, %v915
    %v982 = vpack.c.b16 %v918, %v916
    %1047 = vmatprep.subr.bf16.mxu0 %v934
    %1048 = vmatpush1.bf16.msra.mxu0 %v933
    %1049 = vmatprep.subr.bf16.mxu0 %v932
    %1050 = vmatpush1.bf16.msra.mxu0 %v931
    %1051 = vmatprep.subr.bf16.mxu0 %v930
    %1052 = vmatpush1.bf16.msra.mxu0 %v929
    %1053 = vmatprep.subr.bf16.mxu0 %v928
    %1054 = vmatpush1.bf16.msra.mxu0 %v927
    %1055 = vmatprep.subr.bf16.mxu0 %v926
    %1056 = vmatpush1.bf16.msra.mxu0 %v925
    %1057 = vmatprep.subr.bf16.mxu0 %v924
    %1058 = vmatpush1.bf16.msra.mxu0 %v923
    %1059 = vmatprep.subr.bf16.mxu0 %v922
    %1060 = vmatpush1.bf16.msra.mxu0 %v921
    %1061 = vmatprep.subr.bf16.mxu0 %v920
    %1062 = vmatpush1.bf16.msra.mxu0 %v919
    %1063 = vmatprep.subr.bf16.mxu0 %v950
    %1064 = vmatpush2.bf16.msra.mxu0 %v949
    %1065 = vmatprep.subr.bf16.mxu0 %v948
    %1066 = vmatpush2.bf16.msra.mxu0 %v947
    %1067 = vmatprep.subr.bf16.mxu0 %v946
    %1068 = vmatpush2.bf16.msra.mxu0 %v945
    %1069 = vmatprep.subr.bf16.mxu0 %v944
    %1070 = vmatpush2.bf16.msra.mxu0 %v943
    %1071 = vmatprep.subr.bf16.mxu0 %v942
    %1072 = vmatpush2.bf16.msra.mxu0 %v941
    %1073 = vmatprep.subr.bf16.mxu0 %v940
    %1074 = vmatpush2.bf16.msra.mxu0 %v939
    %1075 = vmatprep.subr.bf16.mxu0 %v938
    %1076 = vmatpush2.bf16.msra.mxu0 %v937
    %1077 = vmatprep.subr.bf16.mxu0 %v936
    %1078 = vmatpush2.bf16.msra.mxu0 %v935
    %1079 = vmatprep.mubr.bf16.mxu0 %v720
    %1080 = vmatmul.mubr.bf16.gmra.mxu0 %v719
    %v1081 = vpop.f32.mrf.mxu0
    %v1082 = vadd.f32 %v700, %v1081
    %v1083 = vpop.f32.mrf.mxu0
    %v1084 = vadd.f32 %v704, %v1083
    %v1085 = vpop.f32.mrf.mxu0
    %v1086 = vadd.f32 %v700, %v1085
    %v1087 = vpop.f32.mrf.mxu0
    %v1088 = vadd.f32 %v704, %v1087
    %1089 = vdwg.mxu0
    %1090 = vmatprep.subr.bf16.mxu0 %v966
    %1091 = vmatpush1.bf16.msra.mxu0 %v965
    %1092 = vmatprep.subr.bf16.mxu0 %v964
    %1093 = vmatpush1.bf16.msra.mxu0 %v963
    %1094 = vmatprep.subr.bf16.mxu0 %v962
    %1095 = vmatpush1.bf16.msra.mxu0 %v961
    %1096 = vmatprep.subr.bf16.mxu0 %v960
    %1097 = vmatpush1.bf16.msra.mxu0 %v959
    %1098 = vmatprep.subr.bf16.mxu0 %v958
    %1099 = vmatpush1.bf16.msra.mxu0 %v957
    %1100 = vmatprep.subr.bf16.mxu0 %v956
    %1101 = vmatpush1.bf16.msra.mxu0 %v955
    %1102 = vmatprep.subr.bf16.mxu0 %v954
    %1103 = vmatpush1.bf16.msra.mxu0 %v953
    %1104 = vmatprep.subr.bf16.mxu0 %v952
    %1105 = vmatpush1.bf16.msra.mxu0 %v951
    %1106 = vmatprep.subr.bf16.mxu0 %v982
    %1107 = vmatpush2.bf16.msra.mxu0 %v981
    %1108 = vmatprep.subr.bf16.mxu0 %v980
    %1109 = vmatpush2.bf16.msra.mxu0 %v979
    %1110 = vmatprep.subr.bf16.mxu0 %v978
    %1111 = vmatpush2.bf16.msra.mxu0 %v977
    %1112 = vmatprep.subr.bf16.mxu0 %v976
    %1113 = vmatpush2.bf16.msra.mxu0 %v975
    %1114 = vmatprep.subr.bf16.mxu0 %v974
    %1115 = vmatpush2.bf16.msra.mxu0 %v973
    %1116 = vmatprep.subr.bf16.mxu0 %v972
    %1117 = vmatpush2.bf16.msra.mxu0 %v971
    %1118 = vmatprep.subr.bf16.mxu0 %v970
    %1119 = vmatpush2.bf16.msra.mxu0 %v969
    %1120 = vmatprep.subr.bf16.mxu0 %v968
    %1121 = vmatpush2.bf16.msra.mxu0 %v967
    %1122 = vmatprep.mubr.bf16.mxu0 %v722
    %1123 = vmatmul.mubr.bf16.gmra.mxu0 %v721
    %v1124 = vpop.f32.mrf.mxu0
    %v1125 = vadd.f32 %v1082, %v1124
    %v1126 = vpop.f32.mrf.mxu0
    %v1127 = vadd.f32 %v1084, %v1126
    %v1128 = vpop.f32.mrf.mxu0
    %v1129 = vadd.f32 %v1086, %v1128
    %v1130 = vpop.f32.mrf.mxu0
    %v1131 = vadd.f32 %v1088, %v1130
    %1132 = vdwg.mxu0
    %v1133 = vmax.f32 %v1125, 0.0
    %v1134 = vmax.f32 %v1127, 0.0
    %v1135 = vmax.f32 %v1129, 0.0
    %v1136 = vmax.f32 %v1131, 0.0
    %v1137 = vpack.c.bf16 %v1135, %v1133
    %v1138 = vpack.c.bf16 %v1136, %v1134
    %v1139 = vld [vmem:[%s9] sm:$0xf]
    %v1140 = vld [vmem:[%s9 + $0x4] sm:$0xf]
    %v1141 = vld [vmem:[%s9 + $0x8] sm:$0xf]
    %v1142 = vld [vmem:[%s9 + $0xc] sm:$0xf]
    %v1143 = vld [vmem:[%s9 + $0x10] sm:$0xf]
    %v1144 = vld [vmem:[%s9 + $0x14] sm:$0xf]
    %v1145 = vld [vmem:[%s9 + $0x18] sm:$0xf]
    %v1146 = vld [vmem:[%s9 + $0x1c] sm:$0xf]
    %v1147 = vld [vmem:[%s9 + $0x20] sm:$0xf]
    %v1148 = vld [vmem:[%s9 + $0x24] sm:$0xf]
    %v1149 = vld [vmem:[%s9 + $0x28] sm:$0xf]
    %v1150 = vld [vmem:[%s9 + $0x2c] sm:$0xf]
    %v1151 = vld [vmem:[%s9 + $0x30] sm:$0xf]
    %v1152 = vld [vmem:[%s9 + $0x34] sm:$0xf]
    %v1153 = vld [vmem:[%s9 + $0x38] sm:$0xf]
    %v1154 = vld [vmem:[%s9 + $0x3c] sm:$0xf]
    %v1155 = vld [vmem:[%s9 + $0x40] sm:$0xf]
    %v1156 = vld [vmem:[%s9 + $0x44] sm:$0xf]
    %v1157 = vld [vmem:[%s9 + $0x48] sm:$0xf]
    %v1158 = vld [vmem:[%s9 + $0x4c] sm:$0xf]
    %v1159 = vld [vmem:[%s9 + $0x50] sm:$0xf]
    %v1160 = vld [vmem:[%s9 + $0x54] sm:$0xf]
    %v1161 = vld [vmem:[%s9 + $0x58] sm:$0xf]
    %v1162 = vld [vmem:[%s9 + $0x5c] sm:$0xf]
    %v1163 = vld [vmem:[%s9 + $0x60] sm:$0xf]
    %v1164 = vld [vmem:[%s9 + $0x64] sm:$0xf]
    %v1165 = vld [vmem:[%s9 + $0x68] sm:$0xf]
    %v1166 = vld [vmem:[%s9 + $0x6c] sm:$0xf]
    %v1167 = vld [vmem:[%s9 + $0x70] sm:$0xf]
    %v1168 = vld [vmem:[%s9 + $0x74] sm:$0xf]
    %v1169 = vld [vmem:[%s9 + $0x78] sm:$0xf]
    %v1170 = vld [vmem:[%s9 + $0x7c] sm:$0xf]
    %v1171 = vld [vmem:[%s10] sm:$0x1]
    %v1173 = vlaneseq
    %v1174 = vshrl.u32 %v1173, 7
    %v1175 = vsub.s32 0, %v1174
    %v1176 = vrot.slane %v1171, %v1175
    %v1210 = vunpack.c.l.b16 %v1139
    %v1211 = vunpack.c.l.b16 %v1140
    %v1212 = vunpack.c.l.b16 %v1141
    %v1213 = vunpack.c.l.b16 %v1142
    %v1214 = vunpack.c.l.b16 %v1143
    %v1215 = vunpack.c.l.b16 %v1144
    %v1216 = vunpack.c.l.b16 %v1145
    %v1217 = vunpack.c.l.b16 %v1146
    %v1218 = vunpack.c.l.b16 %v1147
    %v1219 = vunpack.c.l.b16 %v1148
    %v1220 = vunpack.c.l.b16 %v1149
    %v1221 = vunpack.c.l.b16 %v1150
    %v1222 = vunpack.c.l.b16 %v1151
    %v1223 = vunpack.c.l.b16 %v1152
    %v1224 = vunpack.c.l.b16 %v1153
    %v1225 = vunpack.c.l.b16 %v1154
    %v1226 = vunpack.c.l.b16 %v1155
    %v1227 = vunpack.c.l.b16 %v1156
    %v1228 = vunpack.c.l.b16 %v1157
    %v1229 = vunpack.c.l.b16 %v1158
    %v1230 = vunpack.c.l.b16 %v1159
    %v1231 = vunpack.c.l.b16 %v1160
    %v1232 = vunpack.c.l.b16 %v1161
    %v1233 = vunpack.c.l.b16 %v1162
    %v1234 = vunpack.c.l.b16 %v1163
    %v1235 = vunpack.c.l.b16 %v1164
    %v1236 = vunpack.c.l.b16 %v1165
    %v1237 = vunpack.c.l.b16 %v1166
    %v1238 = vunpack.c.l.b16 %v1167
    %v1239 = vunpack.c.l.b16 %v1168
    %v1240 = vunpack.c.l.b16 %v1169
    %v1241 = vunpack.c.l.b16 %v1170
    %v1242 = vpack.c.b16 %v1211, %v1210
    %v1243 = vpack.c.b16 %v1213, %v1212
    %v1244 = vpack.c.b16 %v1215, %v1214
    %v1245 = vpack.c.b16 %v1217, %v1216
    %v1246 = vpack.c.b16 %v1219, %v1218
    %v1247 = vpack.c.b16 %v1221, %v1220
    %v1248 = vpack.c.b16 %v1223, %v1222
    %v1249 = vpack.c.b16 %v1225, %v1224
    %v1250 = vpack.c.b16 %v1227, %v1226
    %v1251 = vpack.c.b16 %v1229, %v1228
    %v1252 = vpack.c.b16 %v1231, %v1230
    %v1253 = vpack.c.b16 %v1233, %v1232
    %v1254 = vpack.c.b16 %v1235, %v1234
    %v1255 = vpack.c.b16 %v1237, %v1236
    %v1256 = vpack.c.b16 %v1239, %v1238
    %v1257 = vpack.c.b16 %v1241, %v1240
    %1274 = vmatprep.subr.bf16.mxu0 0
    %1275 = vmatpush1.bf16.msra.mxu0 %v1249
    %1276 = vmatprep.subr.bf16.mxu0 0
    %1277 = vmatpush1.bf16.msra.mxu0 %v1248
    %1278 = vmatprep.subr.bf16.mxu0 0
    %1279 = vmatpush1.bf16.msra.mxu0 %v1247
    %1280 = vmatprep.subr.bf16.mxu0 0
    %1281 = vmatpush1.bf16.msra.mxu0 %v1246
    %1282 = vmatprep.subr.bf16.mxu0 0
    %1283 = vmatpush1.bf16.msra.mxu0 %v1245
    %1284 = vmatprep.subr.bf16.mxu0 0
    %1285 = vmatpush1.bf16.msra.mxu0 %v1244
    %1286 = vmatprep.subr.bf16.mxu0 0
    %1287 = vmatpush1.bf16.msra.mxu0 %v1243
    %1288 = vmatprep.subr.bf16.mxu0 0
    %1289 = vmatpush1.bf16.msra.mxu0 %v1242
    %1290 = vmatprep.subr.bf16.mxu0 0
    %1291 = vmatpush2.bf16.msra.mxu0 %v1257
    %1292 = vmatprep.subr.bf16.mxu0 0
    %1293 = vmatpush2.bf16.msra.mxu0 %v1256
    %1294 = vmatprep.subr.bf16.mxu0 0
    %1295 = vmatpush2.bf16.msra.mxu0 %v1255
    %1296 = vmatprep.subr.bf16.mxu0 0
    %1297 = vmatpush2.bf16.msra.mxu0 %v1254
    %1298 = vmatprep.subr.bf16.mxu0 0
    %1299 = vmatpush2.bf16.msra.mxu0 %v1253
    %1300 = vmatprep.subr.bf16.mxu0 0
    %1301 = vmatpush2.bf16.msra.mxu0 %v1252
    %1302 = vmatprep.subr.bf16.mxu0 0
    %1303 = vmatpush2.bf16.msra.mxu0 %v1251
    %1304 = vmatprep.subr.bf16.mxu0 0
    %1305 = vmatpush2.bf16.msra.mxu0 %v1250
    %1306 = vmatprep.mubr.bf16.mxu0 %v1138
    %1307 = vmatmul.mubr.bf16.gmra.mxu0 %v1137
    %v1308 = vpop.f32.mrf.mxu0
    %v1309 = vadd.f32 %v1176, %v1308
    %v1310 = vpop.f32.mrf.mxu0
    %v1311 = vpop.f32.mrf.mxu0
    %v1312 = vadd.f32 %v1176, %v1311
    %v1313 = vpop.f32.mrf.mxu0
    %1314 = vdwg.mxu0
    %v1315 = vpack.c.bf16 %v1312, %v1309
    %v1317 = vunpack.c.l.b16 %v1315
    %v1318 = vunpack.c.h.b16 %v1315
    %v1319 = vpack.c.b16 %v1317, %v1317
    %v1320 = vpack.c.b16 %v1318, %v1318
    %1323 = vst [vmem:[%s11] sm:$0xf] %v1319
    %1324 = vst [vmem:[%s11 + $0x4] sm:$0xf] %v1320
    // Predicated region
    $region54: #{tri_light_net_forward.1} parent=1 // pred_check
      _
    $region55: #{tri_light_net_forward.1} parent=1 // pred_check_branch
      %1326 = sbr.rel (0) target = $region57
    $region56: #{tri_light_net_forward.1} parent=1 // pred_region
      _
    $region57: #{tri_light_net_forward.1} parent=1 // pred_fallthru
      _
    // Predicated region
    $region58: #{tri_light_net_forward.1} parent=1 // pred_check
      _
    $region59: #{tri_light_net_forward.1} parent=1 // pred_check_branch
      %1328 = sbr.rel (0) target = $region61
    $region60: #{tri_light_net_forward.1} parent=1 // pred_region
      _
    $region61: #{tri_light_net_forward.1} parent=1 // pred_fallthru
      _
    %1329 = vsyncpa [#allocation4], 1
    %1330 = vsyncpa [#allocation6], 1

</llo_original>
